<compile_context>
chip_gen: v5e
topology: v5e:2x2
jax: 0.10.0
libtpu: 0.0.40
codegen_flags: <defaults>
</compile_context>

<pallas_src>
import functools

import jax
import jax.numpy as jnp
from jax.experimental import pallas as pl
from jax.experimental.pallas import tpu as pltpu


def _round_up(v, m):
    return ((v + m - 1) // m) * m


def _mlp_kernel(x_ref, w1_ref, b1_ref, w2_ref, b2_ref, w3_ref, b3_ref, o_ref):
    # Layer 1 in f32 (tiny K; keeps full input precision), f32 accumulation.
    h1 = jnp.dot(x_ref[...], w1_ref[...], preferred_element_type=jnp.float32)
    h1 = jnp.maximum(h1 + b1_ref[...], 0.0)
    # Layer 2: bf16 operands (weights pre-cast; activation cast is free VPU work),
    # f32 MXU accumulation, then bias + ReLU in f32.
    h2 = jnp.dot(h1.astype(jnp.bfloat16), w2_ref[...],
                 preferred_element_type=jnp.float32)
    h2 = jnp.maximum(h2 + b2_ref[...], 0.0)
    # Layer 3 (no activation).
    y = jnp.dot(h2.astype(jnp.bfloat16), w3_ref[...],
                preferred_element_type=jnp.float32)
    o_ref[...] = (y + b3_ref[...]).astype(o_ref.dtype)


def prepare_params(w1, b1, w2, b2, w3, b3):
    """One-time parameter prep (hoisted out of the per-call forward path).

    * Casts the two large weight matrices (W2, W3) to bf16.
    * Lane-pads W3/b3 to a multiple of 128 output columns ONLY when nout is large
      and misaligned; for tiny nout an unpadded (masked) store writes far fewer bytes.
    Returns (prepared_params, nout) where nout is the true (un-padded) output width.
    """
    nout = w3.shape[1]
    if nout > 128 and nout % 128 != 0:
        pad = _round_up(nout, 128) - nout
        w3 = jnp.pad(w3, ((0, 0), (0, pad)))
        b3 = jnp.pad(b3, ((0, 0), (0, pad)))
    prepared = (
        w1.astype(jnp.float32), b1.astype(jnp.float32),
        w2.astype(jnp.bfloat16), b2.astype(jnp.float32),
        w3.astype(jnp.bfloat16), b3.astype(jnp.float32),
    )
    return prepared, nout


@functools.partial(jax.jit, static_argnames=("nout", "block_b"))
def classifier_forward(x, w1, b1, w2, b2, w3, b3, *, nout=None, block_b=2048):
    """x: (B, nentities+1) f32.  w_k: (in, out), b_k: (1, out).  Returns (B, nout) f32."""
    B, d_in = x.shape
    nhid1 = w1.shape[1]
    nhid2 = w2.shape[1]
    nout_pad = w3.shape[1]          # may already be lane-padded by prepare_params
    if nout is None:
        nout = nout_pad

    # Robustness for un-prepared callers (no-op when params come from prepare_params).
    if w2.dtype != jnp.bfloat16:
        w2 = w2.astype(jnp.bfloat16)
    if w3.dtype != jnp.bfloat16:
        w3 = w3.astype(jnp.bfloat16)

    # --- Batch tiling ---------------------------------------------------------
    # tb: multiple of 16 (sublane packing insurance), capped at block_b, and chosen
    # so that large B yields >= 2 grid steps (keeps both v7x TensorCores busy).
    tb = max(16, min(block_b, _round_up(pl.cdiv(B, 2), 16)))
    nb = pl.cdiv(B, tb)
    b_pad = nb * tb
    if b_pad != B:
        x = jnp.pad(x, ((0, b_pad - B), (0, 0)))

    flops = 2 * b_pad * (d_in * nhid1 + nhid1 * nhid2 + nhid2 * nout_pad)
    bytes_accessed = (
        b_pad * d_in * 4                           # x in (f32)
        + w1.size * 4 + (w2.size + w3.size) * 2    # resident weights (f32 / bf16)
        + (b1.size + b2.size + b3.size) * 4        # biases (f32)
        + b_pad * nout_pad * 4                     # output (f32)
    )

    out = pl.pallas_call(
        _mlp_kernel,
        out_shape=jax.ShapeDtypeStruct((b_pad, nout_pad), jnp.float32),
        grid=(nb,),
        in_specs=[
            pl.BlockSpec((tb, d_in), lambda i: (i, 0)),        # x tile (pipelined)
            pl.BlockSpec((d_in, nhid1), lambda i: (0, 0)),     # W1 (VMEM-resident, f32)
            pl.BlockSpec((1, nhid1), lambda i: (0, 0)),        # b1
            pl.BlockSpec((nhid1, nhid2), lambda i: (0, 0)),    # W2 (bf16)
            pl.BlockSpec((1, nhid2), lambda i: (0, 0)),        # b2
            pl.BlockSpec((nhid2, nout_pad), lambda i: (0, 0)), # W3 (bf16)
            pl.BlockSpec((1, nout_pad), lambda i: (0, 0)),     # b3
        ],
        out_specs=pl.BlockSpec((tb, nout_pad), lambda i: (i, 0)),
        compiler_params=pltpu.CompilerParams(
            dimension_semantics=("parallel",),      # batch tiles shard across TCs (v7x)
            vmem_limit_bytes=32 * 1024 * 1024,      # explicit: safe on v5e/v6e/v7x
        ),
        cost_estimate=pl.CostEstimate(
            flops=flops, transcendentals=0, bytes_accessed=bytes_accessed),
    )(x, w1, b1, w2, b2, w3, b3)

    if b_pad != B or nout_pad != nout:
        out = out[:B, :nout]
    return out


def init_params(key, nentities, nout, nhid1=128, nhid2=256):
    """Matches Classifier.init_weights: weights ~ U(-0.1, 0.1), biases = 0."""
    initrange = 0.1
    k1, k2, k3 = jax.random.split(key, 3)
    d_in = nentities + 1
    w1 = jax.random.uniform(k1, (d_in, nhid1), jnp.float32, -initrange, initrange)
    w2 = jax.random.uniform(k2, (nhid1, nhid2), jnp.float32, -initrange, initrange)
    w3 = jax.random.uniform(k3, (nhid2, nout), jnp.float32, -initrange, initrange)
    b1 = jnp.zeros((1, nhid1), jnp.float32)
    b2 = jnp.zeros((1, nhid2), jnp.float32)
    b3 = jnp.zeros((1, nout), jnp.float32)
    return w1, b1, w2, b2, w3, b3


if __name__ == "__main__":
    # Small, module-consistent shapes.
    nentities, nout, nhid1, nhid2 = 15, 8, 128, 256
    batch = 8

    key = jax.random.PRNGKey(0)
    kx, kp = jax.random.split(key)
    x = jax.random.normal(kx, (batch, nentities + 1), jnp.float32)
    raw_params = init_params(kp, nentities, nout, nhid1, nhid2)

    # One-time weight prep (bf16 cast / optional lane-padding), reused every call.
    params, true_nout = prepare_params(*raw_params)

    y = classifier_forward(x, *params, nout=true_nout)
    y = jax.block_until_ready(y)
    assert y.shape == (batch, nout)

    w1, b1, w2, b2, w3, b3 = raw_params

    # Reference 1: same precision recipe as the kernel (layer 1 f32; layers 2/3 bf16
    # operands with f32 accumulation) — tight check.
    bf = jnp.bfloat16
    h1 = jnp.maximum(x @ w1 + b1, 0.0)
    h2 = jnp.maximum(
        jnp.dot(h1.astype(bf), w2.astype(bf), preferred_element_type=jnp.float32) + b2, 0.0)
    ref_bf = jnp.dot(h2.astype(bf), w3.astype(bf), preferred_element_type=jnp.float32) + b3
    assert jnp.allclose(y, ref_bf, atol=2e-3, rtol=2e-3), "mismatch vs bf16-operand reference"

    # Reference 2: pure f32 math of the original module (loose — bf16 operand rounding).
    ref_f32 = jnp.maximum(jnp.maximum(x @ w1 + b1, 0.0) @ w2 + b2, 0.0) @ w3 + b3
    assert jnp.allclose(y, ref_f32, atol=2e-2, rtol=2e-2), "mismatch vs f32 reference"

    print("KERNEL_OK")
</pallas_src>

<mosaic_0001>
module attributes {stable_mosaic.version = 11 : i64} {
  func.func @_mlp_kernel(%arg0: i32, %arg1: memref<16x16xf32, #tpu.memory_space<vmem>>, %arg2: memref<16x128xf32, #tpu.memory_space<vmem>>, %arg3: memref<1x128xf32, #tpu.memory_space<vmem>>, %arg4: memref<128x256xbf16, #tpu.memory_space<vmem>>, %arg5: memref<1x256xf32, #tpu.memory_space<vmem>>, %arg6: memref<256x8xbf16, #tpu.memory_space<vmem>>, %arg7: memref<1x8xf32, #tpu.memory_space<vmem>>, %arg8: memref<16x8xf32, #tpu.memory_space<vmem>>) attributes {dimension_semantics = [#tpu.dimension_semantics<parallel>], iteration_bounds = array<i64: 1>, scalar_prefetch = 0 : i64, scratch_operands = 0 : i64, tpu.core_type = #tpu.core_type<tc>, window_params = [{transform_indices = @transform_0, window_bounds = array<i64: 16, 16>}, {pipeline_mode = #tpu.pipeline_mode<synchronous>, transform_indices = @transform_1, window_bounds = array<i64: 16, 128>}, {pipeline_mode = #tpu.pipeline_mode<synchronous>, transform_indices = @transform_2, window_bounds = array<i64: 1, 128>}, {pipeline_mode = #tpu.pipeline_mode<synchronous>, transform_indices = @transform_3, window_bounds = array<i64: 128, 256>}, {pipeline_mode = #tpu.pipeline_mode<synchronous>, transform_indices = @transform_4, window_bounds = array<i64: 1, 256>}, {pipeline_mode = #tpu.pipeline_mode<synchronous>, transform_indices = @transform_5, window_bounds = array<i64: 256, 8>}, {pipeline_mode = #tpu.pipeline_mode<synchronous>, transform_indices = @transform_6, window_bounds = array<i64: 1, 8>}, {transform_indices = @transform_7, window_bounds = array<i64: 16, 8>}]} {
    %c0 = arith.constant 0 : index
    %c0_0 = arith.constant 0 : index
    %0 = vector.load %arg1[%c0, %c0_0] : memref<16x16xf32, #tpu.memory_space<vmem>>, vector<16x16xf32>
    %c0_1 = arith.constant 0 : index
    %c0_2 = arith.constant 0 : index
    %1 = vector.load %arg2[%c0_1, %c0_2] : memref<16x128xf32, #tpu.memory_space<vmem>>, vector<16x128xf32>
    %cst = arith.constant dense<0.000000e+00> : vector<16x128xf32>
    %2 = tpu.matmul %0, %1, %cst {dimension_numbers = #tpu.dot_dimension_numbers<[1], [0], [0], [1], [0, 0, 1, 1], [], []>} : vector<16x16xf32>, vector<16x128xf32>, vector<16x128xf32> -> vector<16x128xf32>
    %c0_3 = arith.constant 0 : index
    %c0_4 = arith.constant 0 : index
    %3 = vector.load %arg3[%c0_3, %c0_4] : memref<1x128xf32, #tpu.memory_space<vmem>>, vector<1x128xf32>
    %4 = vector.broadcast %3 : vector<1x128xf32> to vector<16x128xf32>
    %5 = arith.addf %2, %4 : vector<16x128xf32>
    %cst_5 = arith.constant 0.000000e+00 : f32
    %6 = vector.broadcast %cst_5 : f32 to vector<16x128xf32>
    %7 = arith.maximumf %5, %6 : vector<16x128xf32>
    %8 = arith.truncf %7 : vector<16x128xf32> to vector<16x128xbf16>
    %c0_6 = arith.constant 0 : index
    %c0_7 = arith.constant 0 : index
    %9 = vector.load %arg4[%c0_6, %c0_7] : memref<128x256xbf16, #tpu.memory_space<vmem>>, vector<128x256xbf16>
    %cst_8 = arith.constant dense<0.000000e+00> : vector<16x256xf32>
    %10 = tpu.matmul %8, %9, %cst_8 {dimension_numbers = #tpu.dot_dimension_numbers<[1], [0], [0], [1], [0, 0, 1, 1], [], []>} : vector<16x128xbf16>, vector<128x256xbf16>, vector<16x256xf32> -> vector<16x256xf32>
    %c0_9 = arith.constant 0 : index
    %c0_10 = arith.constant 0 : index
    %11 = vector.load %arg5[%c0_9, %c0_10] : memref<1x256xf32, #tpu.memory_space<vmem>>, vector<1x256xf32>
    %12 = vector.broadcast %11 : vector<1x256xf32> to vector<16x256xf32>
    %13 = arith.addf %10, %12 : vector<16x256xf32>
    %cst_11 = arith.constant 0.000000e+00 : f32
    %14 = vector.broadcast %cst_11 : f32 to vector<16x256xf32>
    %15 = arith.maximumf %13, %14 : vector<16x256xf32>
    %16 = arith.truncf %15 : vector<16x256xf32> to vector<16x256xbf16>
    %c0_12 = arith.constant 0 : index
    %c0_13 = arith.constant 0 : index
    %17 = vector.load %arg6[%c0_12, %c0_13] : memref<256x8xbf16, #tpu.memory_space<vmem>>, vector<256x8xbf16>
    %cst_14 = arith.constant dense<0.000000e+00> : vector<16x8xf32>
    %18 = tpu.matmul %16, %17, %cst_14 {dimension_numbers = #tpu.dot_dimension_numbers<[1], [0], [0], [1], [0, 0, 1, 1], [], []>} : vector<16x256xbf16>, vector<256x8xbf16>, vector<16x8xf32> -> vector<16x8xf32>
    %c0_15 = arith.constant 0 : index
    %c0_16 = arith.constant 0 : index
    %19 = vector.load %arg7[%c0_15, %c0_16] : memref<1x8xf32, #tpu.memory_space<vmem>>, vector<1x8xf32>
    %20 = vector.broadcast %19 : vector<1x8xf32> to vector<16x8xf32>
    %21 = arith.addf %18, %20 : vector<16x8xf32>
    %c0_17 = arith.constant 0 : index
    %c0_18 = arith.constant 0 : index
    %22 = vector.load %arg8[%c0_17, %c0_18] : memref<16x8xf32, #tpu.memory_space<vmem>>, vector<16x8xf32>
    tpu.vector_store %arg8[%c0_17, %c0_18], %21 {strides = array<i32>} : memref<16x8xf32, #tpu.memory_space<vmem>>, vector<16x8xf32>,
    return
  }
  func.func @transform_0(%arg0: i32) -> (i32, i32) {
    %c0_i32 = arith.constant 0 : i32
    %c0_i32_0 = arith.constant 0 : i32
    return %arg0, %c0_i32 : i32, i32
  }
  func.func @transform_1(%arg0: i32) -> (i32, i32) {
    %c0_i32 = arith.constant 0 : i32
    %c0_i32_0 = arith.constant 0 : i32
    %c0_i32_1 = arith.constant 0 : i32
    return %c0_i32, %c0_i32_0 : i32, i32
  }
  func.func @transform_2(%arg0: i32) -> (i32, i32) {
    %c0_i32 = arith.constant 0 : i32
    %c0_i32_0 = arith.constant 0 : i32
    %c0_i32_1 = arith.constant 0 : i32
    return %c0_i32, %c0_i32_0 : i32, i32
  }
  func.func @transform_3(%arg0: i32) -> (i32, i32) {
    %c0_i32 = arith.constant 0 : i32
    %c0_i32_0 = arith.constant 0 : i32
    %c0_i32_1 = arith.constant 0 : i32
    return %c0_i32, %c0_i32_0 : i32, i32
  }
  func.func @transform_4(%arg0: i32) -> (i32, i32) {
    %c0_i32 = arith.constant 0 : i32
    %c0_i32_0 = arith.constant 0 : i32
    %c0_i32_1 = arith.constant 0 : i32
    return %c0_i32, %c0_i32_0 : i32, i32
  }
  func.func @transform_5(%arg0: i32) -> (i32, i32) {
    %c0_i32 = arith.constant 0 : i32
    %c0_i32_0 = arith.constant 0 : i32
    %c0_i32_1 = arith.constant 0 : i32
    return %c0_i32, %c0_i32_0 : i32, i32
  }
  func.func @transform_6(%arg0: i32) -> (i32, i32) {
    %c0_i32 = arith.constant 0 : i32
    %c0_i32_0 = arith.constant 0 : i32
    %c0_i32_1 = arith.constant 0 : i32
    return %c0_i32, %c0_i32_0 : i32, i32
  }
  func.func @transform_7(%arg0: i32) -> (i32, i32) {
    %c0_i32 = arith.constant 0 : i32
    %c0_i32_0 = arith.constant 0 : i32
    return %arg0, %c0_i32 : i32, i32
  }
}

</mosaic_0001>

<llo_original>
// kernel: classifier_forward.1
$region0: #{classifier_forward.1}
  #allocation0 [shape = 'u32[]', space=smem, size = 0x4, offset = 0x4, fixed_abs, tag = 'smem constant byte address 0x4 - core index']
  #allocation1 [shape = 'u32[72,128]{1,0:T(1,128)}', space=vmem, size = 0x9000, scoped, tag = 'internal scratch']
  %s0 = inlined_call_operand.vmem [shape: f32[16,16], index: 0, kind: input, shape index: {}]
  %s1 = inlined_call_operand.vmem [shape: f32[16,128], index: 1, kind: input, shape index: {}]
  %s2 = inlined_call_operand.vmem [shape: f32[1,128], index: 2, kind: input, shape index: {}]
  %s3 = inlined_call_operand.vmem [shape: bf16[128,256], index: 3, kind: input, shape index: {}]
  %s4 = inlined_call_operand.vmem [shape: f32[1,256], index: 4, kind: input, shape index: {}]
  %s5 = inlined_call_operand.vmem [shape: bf16[256,8], index: 5, kind: input, shape index: {}]
  %s6 = inlined_call_operand.vmem [shape: f32[1,8], index: 6, kind: input, shape index: {}]
  %s7 = inlined_call_operand.vmem [shape: f32[16,8], index: 7, kind: output, shape index: {}]
  %s8 = sld [smem:[#allocation0]]
  $region38: #{classifier_forward.1} parent=0
    _
  %s10 = ssub.s32 1, %s8
  %s11 = scalar_select 0, %s10, %s8
  // Predicated region
  $region2: #{classifier_forward.1} parent=0 // pred_check
    _
  $region3: #{classifier_forward.1} parent=0 // pred_check_branch
    %13 = sbr.rel (0) target = $region5
  $region4: #{classifier_forward.1} parent=0 // pred_region
    _
  $region5: #{classifier_forward.1} parent=0 // pred_fallthru
    _
  // Predicated region
  $region6: #{classifier_forward.1} parent=0 // pred_check
    _
  $region7: #{classifier_forward.1} parent=0 // pred_check_branch
    %15 = sbr.rel (0) target = $region9
  $region8: #{classifier_forward.1} parent=0 // pred_region
    _
  $region9: #{classifier_forward.1} parent=0 // pred_fallthru
    _
  // Predicated region
  $region10: #{classifier_forward.1} parent=0 // pred_check
    _
  $region11: #{classifier_forward.1} parent=0 // pred_check_branch
    %17 = sbr.rel (0) target = $region13
  $region12: #{classifier_forward.1} parent=0 // pred_region
    _
  $region13: #{classifier_forward.1} parent=0 // pred_fallthru
    _
  // Predicated region
  $region14: #{classifier_forward.1} parent=0 // pred_check
    _
  $region15: #{classifier_forward.1} parent=0 // pred_check_branch
    %19 = sbr.rel (0) target = $region17
  $region16: #{classifier_forward.1} parent=0 // pred_region
    _
  $region17: #{classifier_forward.1} parent=0 // pred_fallthru
    _
  // Predicated region
  $region18: #{classifier_forward.1} parent=0 // pred_check
    _
  $region19: #{classifier_forward.1} parent=0 // pred_check_branch
    %21 = sbr.rel (0) target = $region21
  $region20: #{classifier_forward.1} parent=0 // pred_region
    _
  $region21: #{classifier_forward.1} parent=0 // pred_fallthru
    _
  // Predicated region
  $region22: #{classifier_forward.1} parent=0 // pred_check
    _
  $region23: #{classifier_forward.1} parent=0 // pred_check_branch
    %23 = sbr.rel (0) target = $region25
  $region24: #{classifier_forward.1} parent=0 // pred_region
    _
  $region25: #{classifier_forward.1} parent=0 // pred_fallthru
    _
  // Predicated region
  $region26: #{classifier_forward.1} parent=0 // pred_check
    _
  $region27: #{classifier_forward.1} parent=0 // pred_check_branch
    %25 = sbr.rel (0) target = $region29
  $region28: #{classifier_forward.1} parent=0 // pred_region
    _
  $region29: #{classifier_forward.1} parent=0 // pred_fallthru
    _
  %v26 = vld [vmem:[%s0] sm:$0xff]
  %v27 = vld [vmem:[%s0 + $0x8] sm:$0xff]
  %v28 = vld [vmem:[%s1] sm:$0xff]
  %v29 = vld [vmem:[%s1 + $0x8] sm:$0xff]
  %v30 = vld [vmem:[%s2] sm:$0x1]
  %v32 = vperm.slane %v30, 0
  %vm34 = vcmask 130048
  %v36 = vsel %vm34, %v26, 0
  %v39 = vsel %vm34, %v27, 0
  %41 = vmatpush.msra.mxu0 0.0
  %42 = vmatpush.msra.mxu0 0.0
  %43 = vmatpush.msra.mxu0 0.0
  %44 = vmatpush.msra.mxu0 0.0
  %45 = vmatpush.msra.mxu0 0.0
  %46 = vmatpush.msra.mxu0 0.0
  %47 = vmatpush.msra.mxu0 0.0
  %48 = vmatpush.msra.mxu0 0.0
  %49 = vmatpush.msra.mxu0 0.0
  %50 = vmatpush.msra.mxu0 0.0
  %51 = vmatpush.msra.mxu0 0.0
  %52 = vmatpush.msra.mxu0 0.0
  %53 = vmatpush.msra.mxu0 0.0
  %54 = vmatpush.msra.mxu0 0.0
  %55 = vmatpush.msra.mxu0 %v29
  %56 = vmatpush.msra.mxu0 %v28
  %57 = vmatmul.f32.gmra.mxu0 %v36
  %v58 = vpop.f32.mrf.mxu0
  %v59 = vadd.f32 %v32, %v58
  %60 = vmatmul.f32.gmra.mxu0 %v39
  %v61 = vpop.f32.mrf.mxu0
  %v62 = vadd.f32 %v32, %v61
  %63 = vdwg.mxu0
  %v64 = vmax.f32 %v59, 0.0
  %v65 = vmax.f32 %v62, 0.0
  %v66 = vpack.c.bf16 %v65, %v64
  %v67 = vld [vmem:[%s3] sm:$0xff]
  %v68 = vld [vmem:[%s3 + $0x8] sm:$0xff]
  %v69 = vld [vmem:[%s3 + $0x10] sm:$0xff]
  %v70 = vld [vmem:[%s3 + $0x18] sm:$0xff]
  %v71 = vld [vmem:[%s3 + $0x20] sm:$0xff]
  %v72 = vld [vmem:[%s3 + $0x28] sm:$0xff]
  %v73 = vld [vmem:[%s3 + $0x30] sm:$0xff]
  %v74 = vld [vmem:[%s3 + $0x38] sm:$0xff]
  %v75 = vld [vmem:[%s3 + $0x40] sm:$0xff]
  %v76 = vld [vmem:[%s3 + $0x48] sm:$0xff]
  %v77 = vld [vmem:[%s3 + $0x50] sm:$0xff]
  %v78 = vld [vmem:[%s3 + $0x58] sm:$0xff]
  %v79 = vld [vmem:[%s3 + $0x60] sm:$0xff]
  %v80 = vld [vmem:[%s3 + $0x68] sm:$0xff]
  %v81 = vld [vmem:[%s3 + $0x70] sm:$0xff]
  %v82 = vld [vmem:[%s3 + $0x78] sm:$0xff]
  %v83 = vld [vmem:[%s4] sm:$0x3]
  %v85 = vperm.slane %v83, 0
  %v86 = vperm.slane %v83, 1
  %v105 = vunpack.c.l.b16 %v67
  %v106 = vunpack.c.h.b16 %v67
  %v107 = vunpack.c.l.b16 %v68
  %v108 = vunpack.c.h.b16 %v68
  %v109 = vunpack.c.l.b16 %v69
  %v110 = vunpack.c.h.b16 %v69
  %v111 = vunpack.c.l.b16 %v70
  %v112 = vunpack.c.h.b16 %v70
  %v113 = vunpack.c.l.b16 %v71
  %v114 = vunpack.c.h.b16 %v71
  %v115 = vunpack.c.l.b16 %v72
  %v116 = vunpack.c.h.b16 %v72
  %v117 = vunpack.c.l.b16 %v73
  %v118 = vunpack.c.h.b16 %v73
  %v119 = vunpack.c.l.b16 %v74
  %v120 = vunpack.c.h.b16 %v74
  %v121 = vunpack.c.l.b16 %v75
  %v122 = vunpack.c.h.b16 %v75
  %v123 = vunpack.c.l.b16 %v76
  %v124 = vunpack.c.h.b16 %v76
  %v125 = vunpack.c.l.b16 %v77
  %v126 = vunpack.c.h.b16 %v77
  %v127 = vunpack.c.l.b16 %v78
  %v128 = vunpack.c.h.b16 %v78
  %v129 = vunpack.c.l.b16 %v79
  %v130 = vunpack.c.h.b16 %v79
  %v131 = vunpack.c.l.b16 %v80
  %v132 = vunpack.c.h.b16 %v80
  %v133 = vunpack.c.l.b16 %v81
  %v134 = vunpack.c.h.b16 %v81
  %v135 = vunpack.c.l.b16 %v82
  %v136 = vunpack.c.h.b16 %v82
  %v137 = vpack.c.b16 %v107, %v105
  %v138 = vpack.c.b16 %v108, %v106
  %v139 = vpack.c.b16 %v111, %v109
  %v140 = vpack.c.b16 %v112, %v110
  %v141 = vpack.c.b16 %v115, %v113
  %v142 = vpack.c.b16 %v116, %v114
  %v143 = vpack.c.b16 %v119, %v117
  %v144 = vpack.c.b16 %v120, %v118
  %v145 = vpack.c.b16 %v123, %v121
  %v146 = vpack.c.b16 %v124, %v122
  %v147 = vpack.c.b16 %v127, %v125
  %v148 = vpack.c.b16 %v128, %v126
  %v149 = vpack.c.b16 %v131, %v129
  %v150 = vpack.c.b16 %v132, %v130
  %v151 = vpack.c.b16 %v135, %v133
  %v152 = vpack.c.b16 %v136, %v134
  %169 = vmatpush.bf16.msra.mxu0 %v151
  %170 = vmatpush.bf16.msra.mxu0 %v149
  %171 = vmatpush.bf16.msra.mxu0 %v147
  %172 = vmatpush.bf16.msra.mxu0 %v145
  %173 = vmatpush.bf16.msra.mxu0 %v143
  %174 = vmatpush.bf16.msra.mxu0 %v141
  %175 = vmatpush.bf16.msra.mxu0 %v139
  %176 = vmatpush.bf16.msra.mxu0 %v137
  %177 = vmatmul.bf16.gmra.mxu0 %v66
  %v178 = vpop.f32.mrf.mxu0
  %v179 = vadd.f32 %v85, %v178
  %v180 = vpop.f32.mrf.mxu0
  %v181 = vadd.f32 %v85, %v180
  %182 = vdwg.mxu0
  %183 = vmatpush.bf16.msra.mxu0 %v152
  %184 = vmatpush.bf16.msra.mxu0 %v150
  %185 = vmatpush.bf16.msra.mxu0 %v148
  %186 = vmatpush.bf16.msra.mxu0 %v146
  %187 = vmatpush.bf16.msra.mxu0 %v144
  %188 = vmatpush.bf16.msra.mxu0 %v142
  %189 = vmatpush.bf16.msra.mxu0 %v140
  %190 = vmatpush.bf16.msra.mxu0 %v138
  %191 = vmatmul.bf16.gmra.mxu0 %v66
  %v192 = vpop.f32.mrf.mxu0
  %v193 = vadd.f32 %v86, %v192
  %v194 = vpop.f32.mrf.mxu0
  %v195 = vadd.f32 %v86, %v194
  %196 = vdwg.mxu0
  %v197 = vmax.f32 %v179, 0.0
  %v198 = vmax.f32 %v193, 0.0
  %v199 = vmax.f32 %v181, 0.0
  %v200 = vmax.f32 %v195, 0.0
  %v201 = vpack.c.bf16 %v199, %v197
  %v202 = vpack.c.bf16 %v200, %v198
  %v203 = vld [vmem:[%s5] sm:$0xf]
  %v204 = vld [vmem:[%s5 + $0x4] sm:$0xf]
  %v205 = vld [vmem:[%s5 + $0x8] sm:$0xf]
  %v206 = vld [vmem:[%s5 + $0xc] sm:$0xf]
  %v207 = vld [vmem:[%s5 + $0x10] sm:$0xf]
  %v208 = vld [vmem:[%s5 + $0x14] sm:$0xf]
  %v209 = vld [vmem:[%s5 + $0x18] sm:$0xf]
  %v210 = vld [vmem:[%s5 + $0x1c] sm:$0xf]
  %v211 = vld [vmem:[%s5 + $0x20] sm:$0xf]
  %v212 = vld [vmem:[%s5 + $0x24] sm:$0xf]
  %v213 = vld [vmem:[%s5 + $0x28] sm:$0xf]
  %v214 = vld [vmem:[%s5 + $0x2c] sm:$0xf]
  %v215 = vld [vmem:[%s5 + $0x30] sm:$0xf]
  %v216 = vld [vmem:[%s5 + $0x34] sm:$0xf]
  %v217 = vld [vmem:[%s5 + $0x38] sm:$0xf]
  %v218 = vld [vmem:[%s5 + $0x3c] sm:$0xf]
  %v219 = vld [vmem:[%s5 + $0x40] sm:$0xf]
  %v220 = vld [vmem:[%s5 + $0x44] sm:$0xf]
  %v221 = vld [vmem:[%s5 + $0x48] sm:$0xf]
  %v222 = vld [vmem:[%s5 + $0x4c] sm:$0xf]
  %v223 = vld [vmem:[%s5 + $0x50] sm:$0xf]
  %v224 = vld [vmem:[%s5 + $0x54] sm:$0xf]
  %v225 = vld [vmem:[%s5 + $0x58] sm:$0xf]
  %v226 = vld [vmem:[%s5 + $0x5c] sm:$0xf]
  %v227 = vld [vmem:[%s5 + $0x60] sm:$0xf]
  %v228 = vld [vmem:[%s5 + $0x64] sm:$0xf]
  %v229 = vld [vmem:[%s5 + $0x68] sm:$0xf]
  %v230 = vld [vmem:[%s5 + $0x6c] sm:$0xf]
  %v231 = vld [vmem:[%s5 + $0x70] sm:$0xf]
  %v232 = vld [vmem:[%s5 + $0x74] sm:$0xf]
  %v233 = vld [vmem:[%s5 + $0x78] sm:$0xf]
  %v234 = vld [vmem:[%s5 + $0x7c] sm:$0xf]
  %v235 = vld [vmem:[%s6] sm:$0x1]
  %v237 = vperm.slane %v235, 0
  %v271 = vunpack.c.l.b16 %v203
  %v272 = vunpack.c.l.b16 %v204
  %v273 = vunpack.c.l.b16 %v205
  %v274 = vunpack.c.l.b16 %v206
  %v275 = vunpack.c.l.b16 %v207
  %v276 = vunpack.c.l.b16 %v208
  %v277 = vunpack.c.l.b16 %v209
  %v278 = vunpack.c.l.b16 %v210
  %v279 = vunpack.c.l.b16 %v211
  %v280 = vunpack.c.l.b16 %v212
  %v281 = vunpack.c.l.b16 %v213
  %v282 = vunpack.c.l.b16 %v214
  %v283 = vunpack.c.l.b16 %v215
  %v284 = vunpack.c.l.b16 %v216
  %v285 = vunpack.c.l.b16 %v217
  %v286 = vunpack.c.l.b16 %v218
  %v287 = vunpack.c.l.b16 %v219
  %v288 = vunpack.c.l.b16 %v220
  %v289 = vunpack.c.l.b16 %v221
  %v290 = vunpack.c.l.b16 %v222
  %v291 = vunpack.c.l.b16 %v223
  %v292 = vunpack.c.l.b16 %v224
  %v293 = vunpack.c.l.b16 %v225
  %v294 = vunpack.c.l.b16 %v226
  %v295 = vunpack.c.l.b16 %v227
  %v296 = vunpack.c.l.b16 %v228
  %v297 = vunpack.c.l.b16 %v229
  %v298 = vunpack.c.l.b16 %v230
  %v299 = vunpack.c.l.b16 %v231
  %v300 = vunpack.c.l.b16 %v232
  %v301 = vunpack.c.l.b16 %v233
  %v302 = vunpack.c.l.b16 %v234
  %v303 = vpack.c.b16 %v272, %v271
  %v304 = vpack.c.b16 %v274, %v273
  %v305 = vpack.c.b16 %v276, %v275
  %v306 = vpack.c.b16 %v278, %v277
  %v307 = vpack.c.b16 %v280, %v279
  %v308 = vpack.c.b16 %v282, %v281
  %v309 = vpack.c.b16 %v284, %v283
  %v310 = vpack.c.b16 %v286, %v285
  %v311 = vpack.c.b16 %v288, %v287
  %v312 = vpack.c.b16 %v290, %v289
  %v313 = vpack.c.b16 %v292, %v291
  %v314 = vpack.c.b16 %v294, %v293
  %v315 = vpack.c.b16 %v296, %v295
  %v316 = vpack.c.b16 %v298, %v297
  %v317 = vpack.c.b16 %v300, %v299
  %v318 = vpack.c.b16 %v302, %v301
  %335 = vmatpush.bf16.msra.mxu0 %v310
  %336 = vmatpush.bf16.msra.mxu0 %v309
  %337 = vmatpush.bf16.msra.mxu0 %v308
  %338 = vmatpush.bf16.msra.mxu0 %v307
  %339 = vmatpush.bf16.msra.mxu0 %v306
  %340 = vmatpush.bf16.msra.mxu0 %v305
  %341 = vmatpush.bf16.msra.mxu0 %v304
  %342 = vmatpush.bf16.msra.mxu0 %v303
  %343 = vmatmul.bf16.gmra.mxu0 %v201
  %v344 = vpop.f32.mrf.mxu0
  %v345 = vadd.f32 %v237, %v344
  %v346 = vpop.f32.mrf.mxu0
  %v347 = vadd.f32 %v237, %v346
  %348 = vdwg.mxu0
  %349 = vmatpush.bf16.msra.mxu0 %v318
  %350 = vmatpush.bf16.msra.mxu0 %v317
  %351 = vmatpush.bf16.msra.mxu0 %v316
  %352 = vmatpush.bf16.msra.mxu0 %v315
  %353 = vmatpush.bf16.msra.mxu0 %v314
  %354 = vmatpush.bf16.msra.mxu0 %v313
  %355 = vmatpush.bf16.msra.mxu0 %v312
  %356 = vmatpush.bf16.msra.mxu0 %v311
  %357 = vmatmul.bf16.gmra.mxu0 %v202
  %v358 = vpop.f32.mrf.mxu0
  %v359 = vadd.f32 %v345, %v358
  %v360 = vpop.f32.mrf.mxu0
  %v361 = vadd.f32 %v347, %v360
  %362 = vdwg.mxu0
  %vm363 = vcmask 64512
  %364 = vst.msk [vmem:[%s7] sm:$0xff] %vm363, %v359
  %365 = vst.msk [vmem:[%s7 + $0x8] sm:$0xff] %vm363, %v361
  // Predicated region
  $region30: #{classifier_forward.1} parent=0 // pred_check
    _
  $region31: #{classifier_forward.1} parent=0 // pred_check_branch
    %367 = sbr.rel (0) target = $region33
  $region32: #{classifier_forward.1} parent=0 // pred_region
    _
  $region33: #{classifier_forward.1} parent=0 // pred_fallthru
    _
  // Predicated region
  $region34: #{classifier_forward.1} parent=0 // pred_check
    _
  $region35: #{classifier_forward.1} parent=0 // pred_check_branch
    %369 = sbr.rel (0) target = $region37
  $region36: #{classifier_forward.1} parent=0 // pred_region
    _
  $region37: #{classifier_forward.1} parent=0 // pred_fallthru
    _

</llo_original>
